<compile_context>
chip_gen: v7x
topology: tpu7x:2x2x1
jax: 0.10.0
libtpu: 0.0.40
codegen_flags: <defaults>
</compile_context>

<pallas_src>
import jax
import jax.numpy as jnp
from jax.experimental import pallas as pl
from jax.experimental.pallas import tpu as pltpu

_LANE = 128
_SUBLANE = 8
_MAX_TILE_ROWS = 2048


def _round_up(v, m):
    return (v + m - 1) // m * m


def _vmem_budget_bytes():
    # Conservative cross-generation budget: leaves headroom inside v7x's
    # 64 MiB/TC and is far below v5e/v6e's 128 MiB.
    budget = 48 * 1024 * 1024
    try:  # refine from the actual chip when the query is available
        cap = getattr(pltpu.get_tpu_info(), "vmem_capacity_bytes", None)
        if cap:
            budget = min(budget, int(cap * 0.75))
    except Exception:
        pass
    return budget


def _pick_tile_rows(n, fixed_bytes, per_row_bytes, budget):
    """Largest row tile that fits the VMEM budget, MXU/megacore friendly."""
    avail = max(budget - fixed_bytes, _SUBLANE * per_row_bytes)
    tm = min(_MAX_TILE_ROWS, max(_SUBLANE, avail // per_row_bytes))
    # Keep >= 2 grid steps when N allows (v7x: give both TensorCores work).
    tm = min(tm, max(_SUBLANE, _round_up(-(-n // 2), _SUBLANE)))
    tm = min(tm, _round_up(n, _SUBLANE))
    # MXU-friendly rounding: 256-multiples once large (v6e/v7x 256x256 MXU),
    # otherwise keep a sublane multiple.
    if tm >= 256:
        tm = (tm // 256) * 256
    else:
        tm = max(_SUBLANE, (tm // _SUBLANE) * _SUBLANE)
    return int(tm)


def _make_kernel(compute_dtype):
    def kernel(x_ref, y_ref, wx_ref, wy_ref, b_ref, o_ref):
        # Cast to the MXU operand dtype in-register (no extra HBM pass); two
        # MXU matmuls accumulate in f32, bias add stays on the f32 accumulator.
        xv = x_ref[...].astype(compute_dtype)
        yv = y_ref[...].astype(compute_dtype)
        acc = jnp.dot(xv, wx_ref[...], preferred_element_type=jnp.float32)
        acc = acc + jnp.dot(yv, wy_ref[...], preferred_element_type=jnp.float32)
        acc = acc + b_ref[...]  # (1, rp) broadcasts over the row tile
        o_ref[...] = acc.astype(o_ref.dtype)

    return kernel


def composition_forward(x, y, wx, wy, b, *, compute_dtype=jnp.bfloat16):
    """compose(x, y) = x @ Wx + y @ Wy + b, batched over rows (one kernel)."""
    n, r = x.shape
    assert y.shape == (n, r) and wx.shape == (r, r) and wy.shape == (r, r)
    assert b.shape == (r,)
    out_dtype = x.dtype
    compute_dtype = jnp.dtype(compute_dtype)

    # Pad only the cheap, grid-invariant operands (weights / bias) so the
    # output last dim is lane-dense; activations are never copied or padded.
    lane_align = 256 if r >= 512 else _LANE  # 256-wide once compute-bound (v6e/v7x)
    rp = _round_up(r, lane_align)

    wx_c = wx.astype(compute_dtype)
    wy_c = wy.astype(compute_dtype)
    b_f32 = b.astype(jnp.float32).reshape(1, r)
    if rp != r:
        wx_c = jnp.zeros((r, rp), compute_dtype).at[:, :r].set(wx_c)
        wy_c = jnp.zeros((r, rp), compute_dtype).at[:, :r].set(wy_c)
        b_f32 = jnp.zeros((1, rp), jnp.float32).at[:, :r].set(b_f32)

    act_isz = jnp.dtype(x.dtype).itemsize
    w_isz = compute_dtype.itemsize
    out_isz = jnp.dtype(out_dtype).itemsize

    budget = _vmem_budget_bytes()
    # Resident part: Wx + Wy (double-buffered by the default pipeline) + bias.
    fixed = 2 * (2 * r * rp * w_isz) + 2 * (rp * 4)
    # Per-row part: double-buffered x, y row tiles and output tile.
    per_row = 2 * (2 * r * act_isz) + 2 * (rp * out_isz)
    tm = _pick_tile_rows(n, fixed, per_row, budget)
    grid = (pl.cdiv(n, tm),)

    working = fixed + tm * per_row
    vmem_limit = int(min(128 * 1024 * 1024,
                         max(working + working // 4 + (1 << 20),
                             16 * 1024 * 1024)))

    cost = pl.CostEstimate(
        flops=4 * n * r * r,                      # two N x R x R matmuls
        transcendentals=0,
        bytes_accessed=(2 * n * r * act_isz       # x, y
                        + 2 * r * rp * w_isz      # Wx, Wy
                        + rp * 4                  # bias
                        + n * rp * out_isz),      # output
    )

    out_p = pl.pallas_call(
        _make_kernel(compute_dtype),
        out_shape=jax.ShapeDtypeStruct((n, rp), out_dtype),
        grid=grid,
        in_specs=[
            pl.BlockSpec((tm, r), lambda i: (i, 0)),   # x row tile
            pl.BlockSpec((tm, r), lambda i: (i, 0)),   # y row tile
            pl.BlockSpec((r, rp), lambda i: (0, 0)),   # Wx (VMEM-resident)
            pl.BlockSpec((r, rp), lambda i: (0, 0)),   # Wy (VMEM-resident)
            pl.BlockSpec((1, rp), lambda i: (0, 0)),   # bias (VMEM-resident)
        ],
        out_specs=pl.BlockSpec((tm, rp), lambda i: (i, 0)),
        compiler_params=pltpu.CompilerParams(
            dimension_semantics=("parallel",),         # megacore / v7x 2-TC split
            vmem_limit_bytes=vmem_limit,
        ),
        cost_estimate=cost,
    )(x, y, wx_c, wy_c, b_f32)

    return out_p if rp == r else out_p[:, :r]


def composition_reference(x, y, wx, wy, b):
    return x @ wx + y @ wy + b.reshape(1, -1)


if __name__ == "__main__":
    key = jax.random.PRNGKey(0)
    nodes, batch, rep = 32, 8, 32        # TRE: one compose() per tree node
    n_rows = nodes * batch               # 256 rows handled by one pallas_call

    kx, ky, kwx, kwy, kb = jax.random.split(key, 5)
    x = jax.random.normal(kx, (n_rows, rep), dtype=jnp.float32)
    y = jax.random.normal(ky, (n_rows, rep), dtype=jnp.float32)
    # Deterministic synthetic parameters (Linear(rep, rep) shapes).
    wx = jax.random.normal(kwx, (rep, rep), dtype=jnp.float32) * 0.1
    wy = jax.random.normal(kwy, (rep, rep), dtype=jnp.float32) * 0.1
    b = jax.random.normal(kb, (rep,), dtype=jnp.float32) * 0.01

    ref = composition_reference(x, y, wx, wy, b)

    # Default path: bf16 MXU operands, f32 accumulation.
    out = composition_forward(x, y, wx, wy, b)
    jax.block_until_ready(out)
    assert out.shape == (n_rows, rep) and out.dtype == x.dtype
    assert jnp.allclose(out, ref, atol=5e-2, rtol=5e-2), "bf16 path mismatch"

    # Bit-exact-ish f32 path (opt-in).
    out_f32 = composition_forward(x, y, wx, wy, b, compute_dtype=jnp.float32)
    jax.block_until_ready(out_f32)
    assert jnp.allclose(out_f32, ref, atol=2e-3, rtol=2e-3), "f32 path mismatch"

    print("KERNEL_OK")
</pallas_src>

<mosaic_0001>
module attributes {stable_mosaic.version = 11 : i64} {
  func.func @kernel(%arg0: i32, %arg1: memref<128x32xf32, #tpu.memory_space<vmem>>, %arg2: memref<128x32xf32, #tpu.memory_space<vmem>>, %arg3: memref<32x128xbf16, #tpu.memory_space<vmem>>, %arg4: memref<32x128xbf16, #tpu.memory_space<vmem>>, %arg5: memref<1x128xf32, #tpu.memory_space<vmem>>, %arg6: memref<128x128xf32, #tpu.memory_space<vmem>>) attributes {dimension_semantics = [#tpu.dimension_semantics<parallel>], iteration_bounds = array<i64: 2>, scalar_prefetch = 0 : i64, scratch_operands = 0 : i64, tpu.core_type = #tpu.core_type<tc>, window_params = [{transform_indices = @transform_0, window_bounds = array<i64: 128, 32>}, {transform_indices = @transform_1, window_bounds = array<i64: 128, 32>}, {pipeline_mode = #tpu.pipeline_mode<synchronous>, transform_indices = @transform_2, window_bounds = array<i64: 32, 128>}, {pipeline_mode = #tpu.pipeline_mode<synchronous>, transform_indices = @transform_3, window_bounds = array<i64: 32, 128>}, {pipeline_mode = #tpu.pipeline_mode<synchronous>, transform_indices = @transform_4, window_bounds = array<i64: 1, 128>}, {transform_indices = @transform_5, window_bounds = array<i64: 128, 128>}]} {
    %c0 = arith.constant 0 : index
    %c0_0 = arith.constant 0 : index
    %0 = vector.load %arg1[%c0, %c0_0] : memref<128x32xf32, #tpu.memory_space<vmem>>, vector<128x32xf32>
    %1 = arith.truncf %0 : vector<128x32xf32> to vector<128x32xbf16>
    %c0_1 = arith.constant 0 : index
    %c0_2 = arith.constant 0 : index
    %2 = vector.load %arg2[%c0_1, %c0_2] : memref<128x32xf32, #tpu.memory_space<vmem>>, vector<128x32xf32>
    %3 = arith.truncf %2 : vector<128x32xf32> to vector<128x32xbf16>
    %c0_3 = arith.constant 0 : index
    %c0_4 = arith.constant 0 : index
    %4 = vector.load %arg3[%c0_3, %c0_4] : memref<32x128xbf16, #tpu.memory_space<vmem>>, vector<32x128xbf16>
    %cst = arith.constant dense<0.000000e+00> : vector<128x128xf32>
    %5 = tpu.matmul %1, %4, %cst {dimension_numbers = #tpu.dot_dimension_numbers<[1], [0], [0], [1], [0, 0, 1, 1], [], []>} : vector<128x32xbf16>, vector<32x128xbf16>, vector<128x128xf32> -> vector<128x128xf32>
    %c0_5 = arith.constant 0 : index
    %c0_6 = arith.constant 0 : index
    %6 = vector.load %arg4[%c0_5, %c0_6] : memref<32x128xbf16, #tpu.memory_space<vmem>>, vector<32x128xbf16>
    %cst_7 = arith.constant dense<0.000000e+00> : vector<128x128xf32>
    %7 = tpu.matmul %3, %6, %cst_7 {dimension_numbers = #tpu.dot_dimension_numbers<[1], [0], [0], [1], [0, 0, 1, 1], [], []>} : vector<128x32xbf16>, vector<32x128xbf16>, vector<128x128xf32> -> vector<128x128xf32>
    %8 = arith.addf %5, %7 : vector<128x128xf32>
    %c0_8 = arith.constant 0 : index
    %c0_9 = arith.constant 0 : index
    %9 = vector.load %arg5[%c0_8, %c0_9] : memref<1x128xf32, #tpu.memory_space<vmem>>, vector<1x128xf32>
    %10 = vector.broadcast %9 : vector<1x128xf32> to vector<128x128xf32>
    %11 = arith.addf %8, %10 : vector<128x128xf32>
    %c0_10 = arith.constant 0 : index
    %c0_11 = arith.constant 0 : index
    %12 = vector.load %arg6[%c0_10, %c0_11] : memref<128x128xf32, #tpu.memory_space<vmem>>, vector<128x128xf32>
    tpu.vector_store %arg6[%c0_10, %c0_11], %11 {strides = array<i32>} : memref<128x128xf32, #tpu.memory_space<vmem>>, vector<128x128xf32>,
    return
  }
  func.func @transform_0(%arg0: i32) -> (i32, i32) {
    %c0_i32 = arith.constant 0 : i32
    %c0_i32_0 = arith.constant 0 : i32
    return %arg0, %c0_i32 : i32, i32
  }
  func.func @transform_1(%arg0: i32) -> (i32, i32) {
    %c0_i32 = arith.constant 0 : i32
    %c0_i32_0 = arith.constant 0 : i32
    return %arg0, %c0_i32 : i32, i32
  }
  func.func @transform_2(%arg0: i32) -> (i32, i32) {
    %c0_i32 = arith.constant 0 : i32
    %c0_i32_0 = arith.constant 0 : i32
    %c0_i32_1 = arith.constant 0 : i32
    return %c0_i32, %c0_i32_0 : i32, i32
  }
  func.func @transform_3(%arg0: i32) -> (i32, i32) {
    %c0_i32 = arith.constant 0 : i32
    %c0_i32_0 = arith.constant 0 : i32
    %c0_i32_1 = arith.constant 0 : i32
    return %c0_i32, %c0_i32_0 : i32, i32
  }
  func.func @transform_4(%arg0: i32) -> (i32, i32) {
    %c0_i32 = arith.constant 0 : i32
    %c0_i32_0 = arith.constant 0 : i32
    %c0_i32_1 = arith.constant 0 : i32
    return %c0_i32, %c0_i32_0 : i32, i32
  }
  func.func @transform_5(%arg0: i32) -> (i32, i32) {
    %c0_i32 = arith.constant 0 : i32
    %c0_i32_0 = arith.constant 0 : i32
    return %arg0, %c0_i32 : i32, i32
  }
}

</mosaic_0001>

<llo_original>
// kernel: tpu_custom_call.1
$region0: #{tpu_custom_call.1}
  #allocation0 [shape = 'u32[]', space=smem, size = 0x4, offset = 0x4, fixed_abs, tag = 'smem constant byte address 0x4 - core index']
  #allocation1 [shape = 'u32[144,128]{1,0:T(1,128)}', space=vmem, size = 0x12000, scoped, tag = 'internal scratch']
  %s0 = inlined_call_operand.vmem [shape: f32[256,32], index: 0, kind: input, shape index: {}]
  %s1 = inlined_call_operand.vmem [shape: f32[256,32], index: 1, kind: input, shape index: {}]
  %s2 = inlined_call_operand.vmem [shape: bf16[32,128], index: 2, kind: input, shape index: {}]
  %s3 = inlined_call_operand.vmem [shape: bf16[32,128], index: 3, kind: input, shape index: {}]
  %s4 = inlined_call_operand.vmem [shape: f32[1,128], index: 4, kind: input, shape index: {}]
  %s5 = inlined_call_operand.hbm [shape: f32[256,128], index: 5, kind: output, shape index: {}]
  %s6 = sld [smem:[#allocation0]]
  $region53: #{tpu_custom_call.1} parent=0
    _
  %s8 = ssub.s32 1, %s6
  %s9 = scalar_select 0, %s8, %s6
  $region1: #{tpu_custom_call.1} parent=0
    #allocation2 [shape = 'u8[131072]{0}', space=vmem, size = 0x20000, scoped, tag = 'output window, operand 0']
    #allocation3 [shape = 's32[2]{0}', space=sflag, size = 0x8, scoped, tag = 'scoped memory for tpu_custom_call.1']
    %10 = vsyncpa [#allocation3], 0
    %s11 = scalar_lea.sflag [#allocation3], 1
    %12 = vsyncpa %s11, 0
    loop: start=0, step=1, limit=4
    $region2: #{tpu_custom_call.1} parent=1 // loop_pre_header
      _
    $region3: #{tpu_custom_call.1} parent=1 // loop_header
      %s14 = sphi 0, %s18
      %p15 = scmp.ge.s32.totalorder %s14, 4
      %s24 = sphi 0, %s26
      %s27 = sphi 0, %s24
      %s28 = sphi 0, %s27
      %s44 = sphi 0, %s28
      %s50 = sphi 0, %s52
      %s53 = sphi 0, %s50
      %s54 = sphi 0, %s53
      %s70 = sphi 0, %s54
      %s74 = sphi 0, %s74
      %s76 = sphi 0, %s74
      %s77 = sphi 0, %s76
      %s91 = sphi 0, %s77
      %s95 = sphi 0, %s95
      %s97 = sphi 0, %s95
      %s98 = sphi 0, %s97
      %s112 = sphi 0, %s98
      %s116 = sphi 0, %s116
      %s118 = sphi 0, %s116
      %s119 = sphi 0, %s118
      %s133 = sphi 0, %s119
      %s139 = sphi 0, %s141
      %s142 = sphi 0, %s139
      %s143 = sphi 0, %s142
      %s159 = sphi 0, %s143
    $region4: #{tpu_custom_call.1} parent=1 // loop_header_branch
      %17 = sbr.rel (%p15) target = $region8
    $region5: #{tpu_custom_call.1} parent=1 // loop_body
      %s19 = ssub.s32 %s14, 1
      %s20 = ssub.s32 %s14, 2
      %s21 = sadd.s32 %s14, 1
      %s22 = ssub.s32 %s14, %s21
      %p23 = scmp.eq.s32.totalorder %s22, 0
      %s25 = sadd.s32 %s24, 1
      %s26 = scalar_select %p23, %s24, %s25
      %p29 = pneg %p23
      %p30 = scmp.eq.s32.totalorder %s14, 1
      %p31 = por %p29, %p30
      %p32 = scmp.ne.s32.totalorder %s24, %s27
      %p33 = scmp.eq.s32.totalorder %s14, 0
      %p34 = por %p32, %p33
      %p35 = scmp.ne.s32.totalorder %s24, %s27
      %p36 = scmp.eq.s32.totalorder %s19, 1
      %p37 = por %p35, %p36
      %p38 = scmp.ne.s32.totalorder %s27, %s28
      %p39 = scmp.eq.s32.totalorder %s19, 0
      %p40 = por %p38, %p39
      %p41 = scmp.ne.s32.totalorder %s27, %s28
      %p42 = scmp.eq.s32.totalorder %s20, 1
      %p43 = por %p41, %p42
      %p45 = scmp.ne.s32.totalorder %s28, %s44
      %p46 = scmp.eq.s32.totalorder %s20, 0
      %p47 = por %p45, %p46
      %s48 = ssub.s32 %s14, %s21
      %p49 = scmp.eq.s32.totalorder %s48, 0
      %s51 = sadd.s32 %s50, 1
      %s52 = scalar_select %p49, %s50, %s51
      %p55 = pneg %p49
      %p56 = scmp.eq.s32.totalorder %s14, 1
      %p57 = por %p55, %p56
      %p58 = scmp.ne.s32.totalorder %s50, %s53
      %p59 = scmp.eq.s32.totalorder %s14, 0
      %p60 = por %p58, %p59
      %p61 = scmp.ne.s32.totalorder %s50, %s53
      %p62 = scmp.eq.s32.totalorder %s19, 1
      %p63 = por %p61, %p62
      %p64 = scmp.ne.s32.totalorder %s53, %s54
      %p65 = scmp.eq.s32.totalorder %s19, 0
      %p66 = por %p64, %p65
      %p67 = scmp.ne.s32.totalorder %s53, %s54
      %p68 = scmp.eq.s32.totalorder %s20, 1
      %p69 = por %p67, %p68
      %p71 = scmp.ne.s32.totalorder %s54, %s70
      %p72 = scmp.eq.s32.totalorder %s20, 0
      %p73 = por %p71, %p72
      %s75 = sadd.s32 %s74, 1
      %p78 = scmp.eq.s32.totalorder %s14, 1
      %p79 = scmp.ne.s32.totalorder %s74, %s76
      %p80 = scmp.eq.s32.totalorder %s14, 0
      %p81 = por %p79, %p80
      %p82 = scmp.ne.s32.totalorder %s74, %s76
      %p83 = scmp.eq.s32.totalorder %s19, 1
      %p84 = por %p82, %p83
      %p85 = scmp.ne.s32.totalorder %s76, %s77
      %p86 = scmp.eq.s32.totalorder %s19, 0
      %p87 = por %p85, %p86
      %p88 = scmp.ne.s32.totalorder %s76, %s77
      %p89 = scmp.eq.s32.totalorder %s20, 1
      %p90 = por %p88, %p89
      %p92 = scmp.ne.s32.totalorder %s77, %s91
      %p93 = scmp.eq.s32.totalorder %s20, 0
      %p94 = por %p92, %p93
      %s96 = sadd.s32 %s95, 1
      %p99 = scmp.eq.s32.totalorder %s14, 1
      %p100 = scmp.ne.s32.totalorder %s95, %s97
      %p101 = scmp.eq.s32.totalorder %s14, 0
      %p102 = por %p100, %p101
      %p103 = scmp.ne.s32.totalorder %s95, %s97
      %p104 = scmp.eq.s32.totalorder %s19, 1
      %p105 = por %p103, %p104
      %p106 = scmp.ne.s32.totalorder %s97, %s98
      %p107 = scmp.eq.s32.totalorder %s19, 0
      %p108 = por %p106, %p107
      %p109 = scmp.ne.s32.totalorder %s97, %s98
      %p110 = scmp.eq.s32.totalorder %s20, 1
      %p111 = por %p109, %p110
      %p113 = scmp.ne.s32.totalorder %s98, %s112
      %p114 = scmp.eq.s32.totalorder %s20, 0
      %p115 = por %p113, %p114
      %s117 = sadd.s32 %s116, 1
      %p120 = scmp.eq.s32.totalorder %s14, 1
      %p121 = scmp.ne.s32.totalorder %s116, %s118
      %p122 = scmp.eq.s32.totalorder %s14, 0
      %p123 = por %p121, %p122
      %p124 = scmp.ne.s32.totalorder %s116, %s118
      %p125 = scmp.eq.s32.totalorder %s19, 1
      %p126 = por %p124, %p125
      %p127 = scmp.ne.s32.totalorder %s118, %s119
      %p128 = scmp.eq.s32.totalorder %s19, 0
      %p129 = por %p127, %p128
      %p130 = scmp.ne.s32.totalorder %s118, %s119
      %p131 = scmp.eq.s32.totalorder %s20, 1
      %p132 = por %p130, %p131
      %p134 = scmp.ne.s32.totalorder %s119, %s133
      %p135 = scmp.eq.s32.totalorder %s20, 0
      %p136 = por %p134, %p135
      %s137 = ssub.s32 %s14, %s21
      %p138 = scmp.eq.s32.totalorder %s137, 0
      %s140 = sadd.s32 %s139, 1
      %s141 = scalar_select %p138, %s139, %s140
      %p144 = pneg %p138
      %p145 = scmp.eq.s32.totalorder %s14, 1
      %p146 = por %p144, %p145
      %p147 = scmp.ne.s32.totalorder %s139, %s142
      %p148 = scmp.eq.s32.totalorder %s14, 0
      %p149 = por %p147, %p148
      %p150 = scmp.ne.s32.totalorder %s139, %s142
      %p151 = scmp.eq.s32.totalorder %s19, 1
      %p152 = por %p150, %p151
      %p153 = scmp.ne.s32.totalorder %s142, %s143
      %p154 = scmp.eq.s32.totalorder %s19, 0
      %p155 = por %p153, %p154
      %p156 = scmp.ne.s32.totalorder %s142, %s143
      %p157 = scmp.eq.s32.totalorder %s20, 1
      %p158 = por %p156, %p157
      %p160 = scmp.ne.s32.totalorder %s143, %s159
      %p161 = scmp.eq.s32.totalorder %s20, 0
      %p162 = por %p160, %p161
      %p163 = scmp.le.s32.totalorder 1, %s14
      %p164 = scmp.lt.s32.totalorder %s14, 3
      %p165 = pnand %p163, %p164
      %p166 = pneg %p165
      // Predicated region
      $region9: #{tpu_custom_call.1} parent=5 // pred_check
        _
      $region10: #{tpu_custom_call.1} parent=5 // pred_check_branch
        %168 = sbr.rel (%p165) target = $region12
      $region11: #{tpu_custom_call.1} parent=5 // pred_region
        %s169 = ssub.s32 %s14, 1
        // Predicated region
        $region13: #{tpu_custom_call.1} parent=11 // pred_check
          %p170 = pneg %p87
        $region14: #{tpu_custom_call.1} parent=11 // pred_check_branch
          %172 = sbr.rel (%p170) target = $region16
        $region15: #{tpu_custom_call.1} parent=11 // pred_region
          _
        $region16: #{tpu_custom_call.1} parent=11 // pred_fallthru
          _
        // Predicated region
        $region17: #{tpu_custom_call.1} parent=11 // pred_check
          %p173 = pneg %p108
        $region18: #{tpu_custom_call.1} parent=11 // pred_check_branch
          %175 = sbr.rel (%p173) target = $region20
        $region19: #{tpu_custom_call.1} parent=11 // pred_region
          _
        $region20: #{tpu_custom_call.1} parent=11 // pred_fallthru
          _
        // Predicated region
        $region21: #{tpu_custom_call.1} parent=11 // pred_check
          %p176 = pneg %p129
        $region22: #{tpu_custom_call.1} parent=11 // pred_check_branch
          %178 = sbr.rel (%p176) target = $region24
        $region23: #{tpu_custom_call.1} parent=11 // pred_region
          _
        $region24: #{tpu_custom_call.1} parent=11 // pred_fallthru
          _
      $region12: #{tpu_custom_call.1} parent=5 // pred_fallthru
        _
      %p179 = scmp.lt.s32.totalorder %s14, 2
      // Predicated region
      $region25: #{tpu_custom_call.1} parent=5 // pred_check
        %p180 = pneg %p179
      $region26: #{tpu_custom_call.1} parent=5 // pred_check_branch
        %182 = sbr.rel (%p180) target = $region28
      $region27: #{tpu_custom_call.1} parent=5 // pred_region
        // Predicated region
        $region29: #{tpu_custom_call.1} parent=27 // pred_check
          %p183 = pneg %p34
        $region30: #{tpu_custom_call.1} parent=27 // pred_check_branch
          %185 = sbr.rel (%p183) target = $region32
        $region31: #{tpu_custom_call.1} parent=27 // pred_region
          %s186 = smul.u32 16, %s14
          %p187 = scmp.lt.s32.totalorder %s186, 31
          %s188 = scalar_select %p187, %s186, 31
          %s189 = smul.addr %s188, 8
          %s190 = scalar_lea.vmem %s0, %s189
          %s191 = smul.u32 16, %s14
        $region32: #{tpu_custom_call.1} parent=27 // pred_fallthru
          _
        // Predicated region
        $region33: #{tpu_custom_call.1} parent=27 // pred_check
          %p192 = pneg %p60
        $region34: #{tpu_custom_call.1} parent=27 // pred_check_branch
          %194 = sbr.rel (%p192) target = $region36
        $region35: #{tpu_custom_call.1} parent=27 // pred_region
          %s195 = smul.u32 16, %s14
          %p196 = scmp.lt.s32.totalorder %s195, 31
          %s197 = scalar_select %p196, %s195, 31
          %s198 = smul.addr %s197, 8
          %s199 = scalar_lea.vmem %s1, %s198
          %s200 = smul.u32 16, %s14
        $region36: #{tpu_custom_call.1} parent=27 // pred_fallthru
          _
      $region28: #{tpu_custom_call.1} parent=5 // pred_fallthru
        _
      %p201 = scmp.le.s32.totalorder 1, %s14
      %p202 = scmp.lt.s32.totalorder %s14, 3
      %p203 = pnand %p201, %p202
      %p204 = pneg %p203
      // Predicated region
      $region37: #{tpu_custom_call.1} parent=5 // pred_check
        _
      $region38: #{tpu_custom_call.1} parent=5 // pred_check_branch
        %206 = sbr.rel (%p203) target = $region40
      $region39: #{tpu_custom_call.1} parent=5 // pred_region
        %s207 = ssub.s32 %s14, 1
        %s208 = smul.u32 16, %s19
        %p209 = scmp.lt.s32.totalorder %s208, 31
        %s210 = scalar_select %p209, %s208, 31
        %s211 = smul.addr %s210, 8
        %s212 = scalar_lea.vmem %s0, %s211
        %p213 = pneg %p40
        %p214 = pneg %p37
        %s215 = smul.u32 16, %s19
        %p216 = scmp.lt.s32.totalorder %s215, 31
        %s217 = scalar_select %p216, %s215, 31
        %s218 = smul.addr %s217, 8
        %s219 = scalar_lea.vmem %s1, %s218
        %p220 = pneg %p66
        %p221 = pneg %p63
        %p222 = pneg %p87
        %p223 = pneg %p84
        %p224 = pneg %p108
        %p225 = pneg %p105
        %p226 = pneg %p129
        %p227 = pneg %p126
        %p228 = pneg %p155
        %p229 = pneg %p152
        %s230 = sand.u32 %s142, 1
        %s231 = scalar_lea.sflag [#allocation3], %s230
        %s232 = sand.u32 %s142, 1
        %s233 = smul.addr %s232, 128
        %s234 = scalar_lea.vmem [#allocation2], %s233
        %s235 = smul.u32 16, %s19
        %p236 = scmp.lt.s32.totalorder %s235, 31
        %s237 = scalar_select %p236, %s235, 31
        %s238 = smul.addr %s237, 8
        %s239 = scalar_lea.vmem %s0, %s238
        %s240 = smul.u32 16, %s19
        %s241 = smul.u32 16, %s19
        %p242 = scmp.lt.s32.totalorder %s241, 31
        %s243 = scalar_select %p242, %s241, 31
        %s244 = smul.addr %s243, 8
        %s245 = scalar_lea.vmem %s1, %s244
        %s246 = smul.u32 16, %s19
        %s247 = smul.u32 16, %s19
        %v249 = vld [vmem:[%s239] sm:$0xff]
        %v250 = vld [vmem:[%s239 + $0x8] sm:$0xff]
        %v251 = vld [vmem:[%s239 + $0x10] sm:$0xff]
        %v252 = vld [vmem:[%s239 + $0x18] sm:$0xff]
        %v253 = vld [vmem:[%s239 + $0x20] sm:$0xff]
        %v254 = vld [vmem:[%s239 + $0x28] sm:$0xff]
        %v255 = vld [vmem:[%s239 + $0x30] sm:$0xff]
        %v256 = vld [vmem:[%s239 + $0x38] sm:$0xff]
        %v257 = vld [vmem:[%s239 + $0x40] sm:$0xff]
        %v258 = vld [vmem:[%s239 + $0x48] sm:$0xff]
        %v259 = vld [vmem:[%s239 + $0x50] sm:$0xff]
        %v260 = vld [vmem:[%s239 + $0x58] sm:$0xff]
        %v261 = vld [vmem:[%s239 + $0x60] sm:$0xff]
        %v262 = vld [vmem:[%s239 + $0x68] sm:$0xff]
        %v263 = vld [vmem:[%s239 + $0x70] sm:$0xff]
        %v264 = vld [vmem:[%s239 + $0x78] sm:$0xff]
        %v265 = vpack.c.bf16 %v250, %v249
        %v266 = vpack.c.bf16 %v252, %v251
        %v267 = vpack.c.bf16 %v254, %v253
        %v268 = vpack.c.bf16 %v256, %v255
        %v269 = vpack.c.bf16 %v258, %v257
        %v270 = vpack.c.bf16 %v260, %v259
        %v271 = vpack.c.bf16 %v262, %v261
        %v272 = vpack.c.bf16 %v264, %v263
        %v273 = vld [vmem:[%s245] sm:$0xff]
        %v274 = vld [vmem:[%s245 + $0x8] sm:$0xff]
        %v275 = vld [vmem:[%s245 + $0x10] sm:$0xff]
        %v276 = vld [vmem:[%s245 + $0x18] sm:$0xff]
        %v277 = vld [vmem:[%s245 + $0x20] sm:$0xff]
        %v278 = vld [vmem:[%s245 + $0x28] sm:$0xff]
        %v279 = vld [vmem:[%s245 + $0x30] sm:$0xff]
        %v280 = vld [vmem:[%s245 + $0x38] sm:$0xff]
        %v281 = vld [vmem:[%s245 + $0x40] sm:$0xff]
        %v282 = vld [vmem:[%s245 + $0x48] sm:$0xff]
        %v283 = vld [vmem:[%s245 + $0x50] sm:$0xff]
        %v284 = vld [vmem:[%s245 + $0x58] sm:$0xff]
        %v285 = vld [vmem:[%s245 + $0x60] sm:$0xff]
        %v286 = vld [vmem:[%s245 + $0x68] sm:$0xff]
        %v287 = vld [vmem:[%s245 + $0x70] sm:$0xff]
        %v288 = vld [vmem:[%s245 + $0x78] sm:$0xff]
        %v289 = vpack.c.bf16 %v274, %v273
        %v290 = vpack.c.bf16 %v276, %v275
        %v291 = vpack.c.bf16 %v278, %v277
        %v292 = vpack.c.bf16 %v280, %v279
        %v293 = vpack.c.bf16 %v282, %v281
        %v294 = vpack.c.bf16 %v284, %v283
        %v295 = vpack.c.bf16 %v286, %v285
        %v296 = vpack.c.bf16 %v288, %v287
        %v297 = vld [vmem:[%s2] sm:$0xf]
        %v298 = vld [vmem:[%s2 + $0x4] sm:$0xf]
        %v299 = vld [vmem:[%s2 + $0x8] sm:$0xf]
        %v300 = vld [vmem:[%s2 + $0xc] sm:$0xf]
        %v301 = vld [vmem:[%s3] sm:$0xf]
        %v302 = vld [vmem:[%s3 + $0x4] sm:$0xf]
        %v303 = vld [vmem:[%s3 + $0x8] sm:$0xf]
        %v304 = vld [vmem:[%s3 + $0xc] sm:$0xf]
        %v309 = vunpack.c.l.b16 %v301
        %v310 = vunpack.c.l.b16 %v302
        %v311 = vunpack.c.l.b16 %v303
        %v312 = vunpack.c.l.b16 %v304
        %v313 = vpack.c.b16 %v310, %v309
        %v314 = vpack.c.b16 %v312, %v311
        %vm317 = vcmask 261120
        %v319 = vsel %vm317, %v289, 0
        %v322 = vsel %vm317, %v290, 0
        %v325 = vsel %vm317, %v291, 0
        %v328 = vsel %vm317, %v292, 0
        %v331 = vsel %vm317, %v293, 0
        %v334 = vsel %vm317, %v294, 0
        %v337 = vsel %vm317, %v295, 0
        %v340 = vsel %vm317, %v296, 0
        %342 = vmatprep.subr.bf16.mxu0 0
        %343 = vmatpush1.bf16.msra.mxu0 %v313
        %344 = vmatprep.subr.bf16.mxu0 0
        %345 = vmatpush1.bf16.msra.mxu0 %v314
        %346 = vmatprep.subr.bf16.mxu0 0
        %347 = vmatpush1.bf16.msra.mxu0 0
        %348 = vmatprep.subr.bf16.mxu0 0
        %349 = vmatpush1.bf16.msra.mxu0 0
        %350 = vmatprep.subr.bf16.mxu0 0
        %351 = vmatpush1.bf16.msra.mxu0 0
        %352 = vmatprep.subr.bf16.mxu0 0
        %353 = vmatpush1.bf16.msra.mxu0 0
        %354 = vmatprep.subr.bf16.mxu0 0
        %355 = vmatpush1.bf16.msra.mxu0 0
        %356 = vmatprep.subr.bf16.mxu0 0
        %357 = vmatpush1.bf16.msra.mxu0 0
        %358 = vmatprep.subr.bf16.mxu0 0
        %359 = vmatpush1.bf16.msra.mxu0 0
        %360 = vmatprep.subr.bf16.mxu0 0
        %361 = vmatpush1.bf16.msra.mxu0 0
        %362 = vmatprep.subr.bf16.mxu0 0
        %363 = vmatpush1.bf16.msra.mxu0 0
        %364 = vmatprep.subr.bf16.mxu0 0
        %365 = vmatpush1.bf16.msra.mxu0 0
        %366 = vmatprep.subr.bf16.mxu0 0
        %367 = vmatpush1.bf16.msra.mxu0 0
        %368 = vmatprep.subr.bf16.mxu0 0
        %369 = vmatpush1.bf16.msra.mxu0 0
        %370 = vmatprep.subr.bf16.mxu0 0
        %371 = vmatpush1.bf16.msra.mxu0 0
        %372 = vmatprep.subr.bf16.mxu0 0
        %373 = vmatpush1.bf16.msra.mxu0 0
        %374 = vmatprep.mubr.bf16.mxu0 0
        %375 = vmatmul.mubr.bf16.gmra.mrb[0].mxu0 %v319
        %v376 = vpop.f32.mrb[0].mxu0
        %v377 = vadd.f32 0.0, %v376
        %v378 = vpop.f32.mrb[0].mxu0
        %v379 = vpop.f32.mrb[0].mxu0
        %v380 = vadd.f32 0.0, %v379
        %v381 = vpop.f32.mrb[0].mxu0
        %382 = vmatprep.mubr.bf16.mxu0 0
        %383 = vmatmul.mubr.bf16.gmra.mrb[0].mxu0 %v322
        %v384 = vpop.f32.mrb[0].mxu0
        %v385 = vadd.f32 0.0, %v384
        %v386 = vpop.f32.mrb[0].mxu0
        %v387 = vpop.f32.mrb[0].mxu0
        %v388 = vadd.f32 0.0, %v387
        %v389 = vpop.f32.mrb[0].mxu0
        %390 = vmatprep.mubr.bf16.mxu0 0
        %391 = vmatmul.mubr.bf16.gmra.mrb[0].mxu0 %v325
        %v392 = vpop.f32.mrb[0].mxu0
        %v393 = vadd.f32 0.0, %v392
        %v394 = vpop.f32.mrb[0].mxu0
        %v395 = vpop.f32.mrb[0].mxu0
        %v396 = vadd.f32 0.0, %v395
        %v397 = vpop.f32.mrb[0].mxu0
        %398 = vmatprep.mubr.bf16.mxu0 0
        %399 = vmatmul.mubr.bf16.gmra.mrb[0].mxu0 %v328
        %v400 = vpop.f32.mrb[0].mxu0
        %v401 = vadd.f32 0.0, %v400
        %v402 = vpop.f32.mrb[0].mxu0
        %v403 = vpop.f32.mrb[0].mxu0
        %v404 = vadd.f32 0.0, %v403
        %v405 = vpop.f32.mrb[0].mxu0
        %406 = vmatprep.mubr.bf16.mxu0 0
        %407 = vmatmul.mubr.bf16.gmra.mrb[0].mxu0 %v331
        %v408 = vpop.f32.mrb[0].mxu0
        %v409 = vadd.f32 0.0, %v408
        %v410 = vpop.f32.mrb[0].mxu0
        %v411 = vpop.f32.mrb[0].mxu0
        %v412 = vadd.f32 0.0, %v411
        %v413 = vpop.f32.mrb[0].mxu0
        %414 = vmatprep.mubr.bf16.mxu0 0
        %415 = vmatmul.mubr.bf16.gmra.mrb[0].mxu0 %v334
        %v416 = vpop.f32.mrb[0].mxu0
        %v417 = vadd.f32 0.0, %v416
        %v418 = vpop.f32.mrb[0].mxu0
        %v419 = vpop.f32.mrb[0].mxu0
        %v420 = vadd.f32 0.0, %v419
        %v421 = vpop.f32.mrb[0].mxu0
        %422 = vmatprep.mubr.bf16.mxu0 0
        %423 = vmatmul.mubr.bf16.gmra.mrb[0].mxu0 %v337
        %v424 = vpop.f32.mrb[0].mxu0
        %v425 = vadd.f32 0.0, %v424
        %v426 = vpop.f32.mrb[0].mxu0
        %v427 = vpop.f32.mrb[0].mxu0
        %v428 = vadd.f32 0.0, %v427
        %v429 = vpop.f32.mrb[0].mxu0
        %430 = vmatprep.mubr.bf16.mxu0 0
        %431 = vmatmul.mubr.bf16.gmra.mrb[0].mxu0 %v340
        %v432 = vpop.f32.mrb[0].mxu0
        %v433 = vadd.f32 0.0, %v432
        %v434 = vpop.f32.mrb[0].mxu0
        %v435 = vpop.f32.mrb[0].mxu0
        %v436 = vadd.f32 0.0, %v435
        %v437 = vpop.f32.mrb[0].mxu0
        %438 = vdwg.mxu0
        %v443 = vunpack.c.l.b16 %v297
        %v444 = vunpack.c.l.b16 %v298
        %v445 = vunpack.c.l.b16 %v299
        %v446 = vunpack.c.l.b16 %v300
        %v447 = vpack.c.b16 %v444, %v443
        %v448 = vpack.c.b16 %v446, %v445
        %v452 = vsel %vm317, %v265, 0
        %v455 = vsel %vm317, %v266, 0
        %v458 = vsel %vm317, %v267, 0
        %v461 = vsel %vm317, %v268, 0
        %v464 = vsel %vm317, %v269, 0
        %v467 = vsel %vm317, %v270, 0
        %v470 = vsel %vm317, %v271, 0
        %v473 = vsel %vm317, %v272, 0
        %475 = vmatprep.subr.bf16.mxu0 0
        %476 = vmatpush1.bf16.msra.mxu0 %v447
        %477 = vmatprep.subr.bf16.mxu0 0
        %478 = vmatpush1.bf16.msra.mxu0 %v448
        %479 = vmatprep.subr.bf16.mxu0 0
        %480 = vmatpush1.bf16.msra.mxu0 0
        %481 = vmatprep.subr.bf16.mxu0 0
        %482 = vmatpush1.bf16.msra.mxu0 0
        %483 = vmatprep.subr.bf16.mxu0 0
        %484 = vmatpush1.bf16.msra.mxu0 0
        %485 = vmatprep.subr.bf16.mxu0 0
        %486 = vmatpush1.bf16.msra.mxu0 0
        %487 = vmatprep.subr.bf16.mxu0 0
        %488 = vmatpush1.bf16.msra.mxu0 0
        %489 = vmatprep.subr.bf16.mxu0 0
        %490 = vmatpush1.bf16.msra.mxu0 0
        %491 = vmatprep.subr.bf16.mxu0 0
        %492 = vmatpush1.bf16.msra.mxu0 0
        %493 = vmatprep.subr.bf16.mxu0 0
        %494 = vmatpush1.bf16.msra.mxu0 0
        %495 = vmatprep.subr.bf16.mxu0 0
        %496 = vmatpush1.bf16.msra.mxu0 0
        %497 = vmatprep.subr.bf16.mxu0 0
        %498 = vmatpush1.bf16.msra.mxu0 0
        %499 = vmatprep.subr.bf16.mxu0 0
        %500 = vmatpush1.bf16.msra.mxu0 0
        %501 = vmatprep.subr.bf16.mxu0 0
        %502 = vmatpush1.bf16.msra.mxu0 0
        %503 = vmatprep.subr.bf16.mxu0 0
        %504 = vmatpush1.bf16.msra.mxu0 0
        %505 = vmatprep.subr.bf16.mxu0 0
        %506 = vmatpush1.bf16.msra.mxu0 0
        %507 = vmatprep.mubr.bf16.mxu0 0
        %508 = vmatmul.mubr.bf16.gmra.mrb[0].mxu0 %v452
        %v509 = vpop.f32.mrb[0].mxu0
        %v510 = vadd.f32 %v377, %v509
        %v511 = vpop.f32.mrb[0].mxu0
        %v512 = vpop.f32.mrb[0].mxu0
        %v513 = vadd.f32 %v380, %v512
        %v514 = vpop.f32.mrb[0].mxu0
        %515 = vmatprep.mubr.bf16.mxu0 0
        %516 = vmatmul.mubr.bf16.gmra.mrb[0].mxu0 %v455
        %v517 = vpop.f32.mrb[0].mxu0
        %v518 = vadd.f32 %v385, %v517
        %v519 = vpop.f32.mrb[0].mxu0
        %v520 = vpop.f32.mrb[0].mxu0
        %v521 = vadd.f32 %v388, %v520
        %v522 = vpop.f32.mrb[0].mxu0
        %523 = vmatprep.mubr.bf16.mxu0 0
        %524 = vmatmul.mubr.bf16.gmra.mrb[0].mxu0 %v458
        %v525 = vpop.f32.mrb[0].mxu0
        %v526 = vadd.f32 %v393, %v525
        %v527 = vpop.f32.mrb[0].mxu0
        %v528 = vpop.f32.mrb[0].mxu0
        %v529 = vadd.f32 %v396, %v528
        %v530 = vpop.f32.mrb[0].mxu0
        %531 = vmatprep.mubr.bf16.mxu0 0
        %532 = vmatmul.mubr.bf16.gmra.mrb[0].mxu0 %v461
        %v533 = vpop.f32.mrb[0].mxu0
        %v534 = vadd.f32 %v401, %v533
        %v535 = vpop.f32.mrb[0].mxu0
        %v536 = vpop.f32.mrb[0].mxu0
        %v537 = vadd.f32 %v404, %v536
        %v538 = vpop.f32.mrb[0].mxu0
        %539 = vmatprep.mubr.bf16.mxu0 0
        %540 = vmatmul.mubr.bf16.gmra.mrb[0].mxu0 %v464
        %v541 = vpop.f32.mrb[0].mxu0
        %v542 = vadd.f32 %v409, %v541
        %v543 = vpop.f32.mrb[0].mxu0
        %v544 = vpop.f32.mrb[0].mxu0
        %v545 = vadd.f32 %v412, %v544
        %v546 = vpop.f32.mrb[0].mxu0
        %547 = vmatprep.mubr.bf16.mxu0 0
        %548 = vmatmul.mubr.bf16.gmra.mrb[0].mxu0 %v467
        %v549 = vpop.f32.mrb[0].mxu0
        %v550 = vadd.f32 %v417, %v549
        %v551 = vpop.f32.mrb[0].mxu0
        %v552 = vpop.f32.mrb[0].mxu0
        %v553 = vadd.f32 %v420, %v552
        %v554 = vpop.f32.mrb[0].mxu0
        %555 = vmatprep.mubr.bf16.mxu0 0
        %556 = vmatmul.mubr.bf16.gmra.mrb[0].mxu0 %v470
        %v557 = vpop.f32.mrb[0].mxu0
        %v558 = vadd.f32 %v425, %v557
        %v559 = vpop.f32.mrb[0].mxu0
        %v560 = vpop.f32.mrb[0].mxu0
        %v561 = vadd.f32 %v428, %v560
        %v562 = vpop.f32.mrb[0].mxu0
        %563 = vmatprep.mubr.bf16.mxu0 0
        %564 = vmatmul.mubr.bf16.gmra.mrb[0].mxu0 %v473
        %v565 = vpop.f32.mrb[0].mxu0
        %v566 = vadd.f32 %v433, %v565
        %v567 = vpop.f32.mrb[0].mxu0
        %v568 = vpop.f32.mrb[0].mxu0
        %v569 = vadd.f32 %v436, %v568
        %v570 = vpop.f32.mrb[0].mxu0
        %571 = vdwg.mxu0
        %v572 = vld [vmem:[%s4] sm:$0x1]
        %v574 = vlaneseq
        %v575 = vshrl.u32 %v574, 7
        %v576 = vsub.s32 0, %v575
        %v577 = vrot.slane %v572, %v576
        %v579 = vadd.f32 %v510, %v577
        %v580 = vadd.f32 %v513, %v577
        %v581 = vadd.f32 %v518, %v577
        %v582 = vadd.f32 %v521, %v577
        %v583 = vadd.f32 %v526, %v577
        %v584 = vadd.f32 %v529, %v577
        %v585 = vadd.f32 %v534, %v577
        %v586 = vadd.f32 %v537, %v577
        %v587 = vadd.f32 %v542, %v577
        %v588 = vadd.f32 %v545, %v577
        %v589 = vadd.f32 %v550, %v577
        %v590 = vadd.f32 %v553, %v577
        %v591 = vadd.f32 %v558, %v577
        %v592 = vadd.f32 %v561, %v577
        %v593 = vadd.f32 %v566, %v577
        %v594 = vadd.f32 %v569, %v577
        %595 = vst [vmem:[%s234] sm:$0xff] %v579
        %596 = vst [vmem:[%s234 + $0x8] sm:$0xff] %v580
        %597 = vst [vmem:[%s234 + $0x10] sm:$0xff] %v581
        %598 = vst [vmem:[%s234 + $0x18] sm:$0xff] %v582
        %599 = vst [vmem:[%s234 + $0x20] sm:$0xff] %v583
        %600 = vst [vmem:[%s234 + $0x28] sm:$0xff] %v584
        %601 = vst [vmem:[%s234 + $0x30] sm:$0xff] %v585
        %602 = vst [vmem:[%s234 + $0x38] sm:$0xff] %v586
        %603 = vst [vmem:[%s234 + $0x40] sm:$0xff] %v587
        %604 = vst [vmem:[%s234 + $0x48] sm:$0xff] %v588
        %605 = vst [vmem:[%s234 + $0x50] sm:$0xff] %v589
        %606 = vst [vmem:[%s234 + $0x58] sm:$0xff] %v590
        %607 = vst [vmem:[%s234 + $0x60] sm:$0xff] %v591
        %608 = vst [vmem:[%s234 + $0x68] sm:$0xff] %v592
        %609 = vst [vmem:[%s234 + $0x70] sm:$0xff] %v593
        %610 = vst [vmem:[%s234 + $0x78] sm:$0xff] %v594
        %s611 = sand.u32 %s142, 1
        %s612 = scalar_lea.sflag [#allocation3], %s611
        %s613 = sand.u32 %s142, 1
        %s614 = smul.addr %s613, 128
        %s615 = scalar_lea.vmem [#allocation2], %s614
        // Predicated region
        $region41: #{tpu_custom_call.1} parent=39 // pred_check
          %p616 = pneg %p152
        $region42: #{tpu_custom_call.1} parent=39 // pred_check_branch
          %618 = sbr.rel (%p616) target = $region44
        $region43: #{tpu_custom_call.1} parent=39 // pred_region
          %s619 = smul.u32 16, %s19
          %s621 = ssub.s32 2048, 2048
          %622 = vsyncadd %s612, %s621
          %s623 = smul.addr %s619, 128
          %s624 = scalar_lea.hbm %s5, %s623
          %s625 = sshll.u32 %s615, 4
          %s626 = int_to_ptr.vmem [resolvable:$true] %s625
          %631 = dma.vmem_to_hbm [thread:$0]  %s626, 2048, %s624, %s612, 128, 128, 8
        $region44: #{tpu_custom_call.1} parent=39 // pred_fallthru
          _
      $region40: #{tpu_custom_call.1} parent=5 // pred_fallthru
        _
      %p632 = scmp.le.s32.totalorder 2, %s14
      // Predicated region
      $region45: #{tpu_custom_call.1} parent=5 // pred_check
        %p633 = pneg %p632
      $region46: #{tpu_custom_call.1} parent=5 // pred_check_branch
        %635 = sbr.rel (%p633) target = $region48
      $region47: #{tpu_custom_call.1} parent=5 // pred_region
        %s636 = ssub.s32 %s14, 2
        // Predicated region
        $region49: #{tpu_custom_call.1} parent=47 // pred_check
          %p637 = pneg %p158
        $region50: #{tpu_custom_call.1} parent=47 // pred_check_branch
          %639 = sbr.rel (%p637) target = $region52
        $region51: #{tpu_custom_call.1} parent=47 // pred_region
          %s640 = sand.u32 %s143, 1
          %s641 = scalar_lea.sflag [#allocation3], %s640
          %s642 = sand.u32 %s143, 1
          %s643 = smul.addr %s642, 128
          %s644 = scalar_lea.vmem [#allocation2], %s643
          %645 = dma.done %s641, 2048
        $region52: #{tpu_custom_call.1} parent=47 // pred_fallthru
          _
      $region48: #{tpu_custom_call.1} parent=5 // pred_fallthru
        _
    $region6: #{tpu_custom_call.1} parent=1 // loop_footer
      %s18 = sadd.s32 1, %s14
    $region7: #{tpu_custom_call.1} parent=1 // loop_footer_branch
      %13 = sbr.rel target = $region3
    $region8: #{tpu_custom_call.1} parent=1 // loop_exit
      _
    %646 = vsyncpa [#allocation3], 1
    %s647 = scalar_lea.sflag [#allocation3], 1
    %648 = vsyncpa %s647, 1

</llo_original>
